<compile_context>
chip_gen: v5e
topology: v5e:2x2
jax: 0.10.0
libtpu: 0.0.40
codegen_flags: <defaults>
</compile_context>

<pallas_src>
import functools
from typing import NamedTuple

import jax
import jax.numpy as jnp
from jax import lax
from jax.experimental import pallas as pl
from jax.experimental.pallas import tpu as pltpu


def _round_up(n, m):
    return ((n + m - 1) // m) * m


def _vmem_budget_bytes():
    """Generation-aware VMEM budget: ~3/4 of physical capacity, capped.

    v5e/v6e (128 MiB physical) -> ~96 MiB; v7x (64 MiB) -> 48 MiB.
    Falls back to the conservative 48 MiB if the hardware query fails.
    """
    cap = 64 << 20
    try:
        info = pltpu.get_tpu_info()
        for attr in ("vmem_capacity_bytes", "vmem_size_bytes", "vmem_bytes"):
            v = getattr(info, attr, None)
            if v:
                cap = int(v)
                break
    except Exception:
        pass
    return max(32 << 20, min((cap * 3) // 4, 100 << 20))


class PreparedFFN(NamedTuple):
    gamma: jax.Array   # (1, Dp)  f32, zero-padded
    beta: jax.Array    # (1, Dp)  f32, zero-padded
    w1_t: jax.Array    # (Dp, Hp) compute dtype  (= W1.T, zero-padded)
    w2_t: jax.Array    # (Hp, Dp) compute dtype  (= W2.T, zero-padded)
    d_in: int
    d_hid: int


def prepare_ffn_weights(gamma, beta, w1, w2, compute_dtype=jnp.bfloat16):
    """One-time weight prep (transpose + lane-pad + bf16 cast).

    Hoisted out of the per-call path so the HBM transpose/cast of W1/W2 is not
    paid on every forward.
    """
    d_hid, d_in = w1.shape
    Dp = _round_up(d_in, 128)
    Hp = _round_up(d_hid, 128)
    w1_t = jnp.pad(jnp.transpose(w1),
                   ((0, Dp - d_in), (0, Hp - d_hid))).astype(compute_dtype)
    w2_t = jnp.pad(jnp.transpose(w2),
                   ((0, Hp - d_hid), (0, Dp - d_in))).astype(compute_dtype)
    g = jnp.pad(jnp.reshape(gamma, (1, d_in)).astype(jnp.float32),
                ((0, 0), (0, Dp - d_in)))
    b = jnp.pad(jnp.reshape(beta, (1, d_in)).astype(jnp.float32),
                ((0, 0), (0, Dp - d_in)))
    return PreparedFFN(g, b, w1_t, w2_t, d_in, d_hid)


def _ffn_kernel(x_ref, gamma_ref, beta_ref, w1_ref, w2_ref, scale_ref,
                o_ref, *scratch,
                norm: bool, d_in: int, eps: float, compute_dtype, multi_chunk: bool):

    def normalized():
        x = x_ref[...].astype(jnp.float32)                         # (TR, Dp)
        if norm:
            # Single-pass LayerNorm stats over the TRUE d_in features.
            # Padded feature columns are zero so sums are unaffected; padded
            # gamma/beta are zero so padded outputs stay zero.
            inv_d = 1.0 / float(d_in)
            m1 = jnp.sum(x, axis=-1, keepdims=True) * inv_d        # E[x]
            m2 = jnp.sum(x * x, axis=-1, keepdims=True) * inv_d    # E[x^2]
            var = jnp.maximum(m2 - m1 * m1, 0.0)
            xn = (x - m1) * lax.rsqrt(var + eps)
            xn = xn * gamma_ref[...] + beta_ref[...]
        else:
            xn = x
        return xn.astype(compute_dtype)                            # bf16 for MXU

    def finalize(y):
        if norm:
            y = y * scale_ref[0] + x_ref[...].astype(jnp.float32)
        o_ref[...] = y.astype(o_ref.dtype)

    if not multi_chunk:
        # Weights-resident single-chunk path: no scratch, direct write.
        xn = normalized()
        h = jnp.maximum(
            jnp.dot(xn, w1_ref[...], preferred_element_type=jnp.float32), 0.0)
        finalize(jnp.dot(h.astype(compute_dtype), w2_ref[...],
                         preferred_element_type=jnp.float32))
        return

    xn_ref, acc_ref = scratch
    k = pl.program_id(1)
    nk = pl.num_programs(1)

    @pl.when(k == 0)
    def _norm_once():
        xn_ref[...] = normalized()

    # Hot path: two MXU matmuls over one d_hid chunk, f32 accumulation.
    h = jnp.maximum(
        jnp.dot(xn_ref[...], w1_ref[...], preferred_element_type=jnp.float32), 0.0)
    contrib = jnp.dot(h.astype(compute_dtype), w2_ref[...],
                      preferred_element_type=jnp.float32)          # (TR, Dp)

    @pl.when(k == 0)
    def _first():
        acc_ref[...] = contrib          # write (no zero-init pass)

    @pl.when(k > 0)
    def _rest():
        acc_ref[...] += contrib

    @pl.when(k == nk - 1)
    def _fin():
        finalize(acc_ref[...])


def _select_tiles(N, Dp, H128, x_bytes, out_bytes, compute_bytes, budget,
                  row_tile=None, hid_chunk=None,
                  row_tile_max=1024, hid_chunk_max=2048):
    """Derive (tile_rows, hid_chunk) from the VMEM budget."""
    n_units = H128 // 128
    w_pair = 2 * Dp * H128 * compute_bytes            # W1^T + W2^T (HBM size)

    if hid_chunk is not None:
        hc = _round_up(min(hid_chunk, H128), 128)
        while H128 % hc:                               # snap to a divisor of H128
            hc -= 128
        hid_chunk = hc
    elif 2 * w_pair <= budget // 2:
        # Weights-resident: single chunk, weights fetched from HBM exactly once.
        hid_chunk = H128
    else:
        unit_pair = 2 * (2 * Dp * 128 * compute_bytes)   # dbl-buffered 128-wide pair
        max_units = max(1, min(hid_chunk_max // 128, (budget // 2) // unit_pair))
        best = 1
        for u in range(1, min(max_units, n_units) + 1):
            if n_units % u == 0:
                best = u                                  # no over-padded d_hid
        hid_chunk = best * 128

    multi = (H128 // hid_chunk) > 1

    w_buf = 2 * (2 * Dp * hid_chunk * compute_bytes)      # dbl-buffered chunk pair
    per_row = Dp * (2 * x_bytes + 2 * out_bytes)          # dbl-buffered x-in / y-out
    if multi:
        per_row += Dp * (compute_bytes + 4)               # xn scratch + f32 acc

    auto_rows = row_tile is None
    if auto_rows:
        avail = budget - w_buf - (2 << 20)                # headroom
        row_tile = max(8, min(row_tile_max, avail // per_row))
    tile_rows = max(8, (int(row_tile) // 8) * 8)

    N8 = _round_up(N, 8)
    tile_rows = min(tile_rows, N8)
    # Keep >= 2 row tiles so the "parallel" axis can shard across v7x's 2 TCs.
    if auto_rows and tile_rows >= N8 and N8 >= 16:
        tile_rows = _round_up(-(-N8 // 2), 8)
    return tile_rows, hid_chunk


def positionwise_feed_forward(x, params: PreparedFFN, scale=1.0, norm=True,
                              eps=1e-5, row_tile=None, hid_chunk=None,
                              row_tile_max=1024, hid_chunk_max=2048):
    """x: (B, S, d_in); params from prepare_ffn_weights()."""
    B, S, D = x.shape
    assert D == params.d_in, "x feature dim must match prepared weights"
    compute_dtype = params.w1_t.dtype
    Dp, H128 = params.w1_t.shape
    N = B * S

    budget = _vmem_budget_bytes()
    tile_rows, hid_chunk = _select_tiles(
        N, Dp, H128,
        x_bytes=x.dtype.itemsize, out_bytes=x.dtype.itemsize,
        compute_bytes=jnp.dtype(compute_dtype).itemsize, budget=budget,
        row_tile=row_tile, hid_chunk=hid_chunk,
        row_tile_max=row_tile_max, hid_chunk_max=hid_chunk_max)

    Np = _round_up(N, tile_rows)
    n_row_tiles = Np // tile_rows
    n_hid_chunks = H128 // hid_chunk
    multi = n_hid_chunks > 1

    x2 = jnp.pad(x.reshape(N, D), ((0, Np - N), (0, Dp - D)))
    scale_arr = jnp.asarray([scale], dtype=jnp.float32)

    kernel = functools.partial(_ffn_kernel, norm=norm, d_in=D, eps=eps,
                               compute_dtype=compute_dtype, multi_chunk=multi)

    scratch = []
    if multi:
        scratch = [pltpu.VMEM((tile_rows, Dp), compute_dtype),   # normalized x
                   pltpu.VMEM((tile_rows, Dp), jnp.float32)]     # f32 accumulator

    w_hbm_bytes = 2 * Dp * H128 * jnp.dtype(compute_dtype).itemsize
    cost = pl.CostEstimate(
        flops=4 * Np * Dp * H128,                       # two matmuls
        transcendentals=Np if norm else 0,              # one rsqrt per row
        bytes_accessed=(x2.size * x2.dtype.itemsize
                        + Np * Dp * x.dtype.itemsize
                        + (1 if not multi else n_row_tiles) * w_hbm_bytes),
    )

    out2 = pl.pallas_call(
        kernel,
        out_shape=jax.ShapeDtypeStruct((Np, Dp), x.dtype),
        grid_spec=pltpu.PrefetchScalarGridSpec(
            num_scalar_prefetch=0,
            grid=(n_row_tiles, n_hid_chunks),
            in_specs=[
                pl.BlockSpec((tile_rows, Dp), lambda i, k: (i, 0)),     # x rows
                pl.BlockSpec((1, Dp), lambda i, k: (0, 0)),             # gamma
                pl.BlockSpec((1, Dp), lambda i, k: (0, 0)),             # beta
                pl.BlockSpec((Dp, hid_chunk), lambda i, k: (0, k)),     # W1^T chunk
                pl.BlockSpec((hid_chunk, Dp), lambda i, k: (k, 0)),     # W2^T chunk
                pl.BlockSpec(memory_space=pltpu.SMEM),                  # scale
            ],
            out_specs=pl.BlockSpec((tile_rows, Dp), lambda i, k: (i, 0)),
            scratch_shapes=scratch,
        ),
        compiler_params=pltpu.CompilerParams(
            dimension_semantics=("parallel", "arbitrary"),
            vmem_limit_bytes=budget,
        ),
        cost_estimate=cost,
    )(x2, params.gamma, params.beta, params.w1_t, params.w2_t, scale_arr)

    return out2[:N, :D].reshape(B, S, D)


def _reference(x, gamma, beta, w1, w2, scale=1.0, norm=True, eps=1e-5,
               compute_dtype=jnp.bfloat16):
    """Pure-JAX reference with the same numerics (bf16 MXU inputs, f32 acc)."""
    xf = x.astype(jnp.float32)
    residual = xf
    if norm:
        d_in = x.shape[-1]
        m1 = jnp.sum(xf, axis=-1, keepdims=True) / d_in
        m2 = jnp.sum(xf * xf, axis=-1, keepdims=True) / d_in
        var = jnp.maximum(m2 - m1 * m1, 0.0)
        xf = (xf - m1) * lax.rsqrt(var + eps) * gamma + beta
    h = jnp.dot(xf.astype(compute_dtype),
                jnp.transpose(w1).astype(compute_dtype),
                preferred_element_type=jnp.float32)
    h = jnp.maximum(h, 0.0)
    y = jnp.dot(h.astype(compute_dtype),
                jnp.transpose(w2).astype(compute_dtype),
                preferred_element_type=jnp.float32)
    if norm:
        y = y * scale + residual
    return y.astype(x.dtype)


if __name__ == "__main__":
    key = jax.random.PRNGKey(0)

    def make_inputs(k, B, S, d_in, d_hid):
        kx, kw1, kw2, kg, kb = jax.random.split(k, 5)
        x = jax.random.normal(kx, (B, S, d_in), dtype=jnp.float32)
        # nn.Linear(d_in, d_hid, bias=False) -> weight shape (d_hid, d_in)
        w1 = jax.random.normal(kw1, (d_hid, d_in), jnp.float32) / d_in ** 0.5
        # nn.Linear(d_hid, d_in, bias=False) -> weight shape (d_in, d_hid)
        w2 = jax.random.normal(kw2, (d_in, d_hid), jnp.float32) / d_hid ** 0.5
        gamma = jnp.ones((d_in,), jnp.float32) + 0.01 * jax.random.normal(kg, (d_in,))
        beta = 0.01 * jax.random.normal(kb, (d_in,))
        return x, gamma, beta, w1, w2

    k1, k2 = jax.random.split(key)

    # Case 1: module's small shapes (batch=2, seq=8, d_in=32, d_hid=64);
    #         auto tiling -> weights-resident single-chunk path, >=2 row tiles.
    x, gamma, beta, w1, w2 = make_inputs(k1, 2, 8, 32, 64)
    params = prepare_ffn_weights(gamma, beta, w1, w2)      # one-time weight prep
    out = positionwise_feed_forward(x, params, scale=0.5, norm=True)
    out = jax.block_until_ready(out)
    ref = _reference(x, gamma, beta, w1, w2, scale=0.5, norm=True)
    assert jnp.allclose(out, ref, atol=2e-3, rtol=2e-3), "case 1 mismatch"

    # Case 1b: norm=False branch (no LayerNorm, no residual/scale).
    out_nb = positionwise_feed_forward(x, params, scale=1.0, norm=False)
    out_nb = jax.block_until_ready(out_nb)
    ref_nb = _reference(x, gamma, beta, w1, w2, scale=1.0, norm=False)
    assert jnp.allclose(out_nb, ref_nb, atol=2e-3, rtol=2e-3), "case 1b mismatch"

    # Case 2: force the chunked-d_hid accumulator path (multi row tile x
    #         multi hid chunk grid) on still-small shapes.
    x2, gamma2, beta2, w12, w22 = make_inputs(k2, 2, 8, 32, 256)
    params2 = prepare_ffn_weights(gamma2, beta2, w12, w22)
    out2 = positionwise_feed_forward(x2, params2, scale=1.0, norm=True,
                                     row_tile=8, hid_chunk=128)
    out2 = jax.block_until_ready(out2)
    ref2 = _reference(x2, gamma2, beta2, w12, w22, scale=1.0, norm=True)
    assert jnp.allclose(out2, ref2, atol=2e-3, rtol=2e-3), "case 2 mismatch"

    print("KERNEL_OK")
</pallas_src>

<mosaic_0001>
module attributes {stable_mosaic.version = 11 : i64} {
  func.func @_ffn_kernel(%arg0: i32, %arg1: i32, %arg2: memref<8x128xf32, #tpu.memory_space<vmem>>, %arg3: memref<1x128xf32, #tpu.memory_space<vmem>>, %arg4: memref<1x128xf32, #tpu.memory_space<vmem>>, %arg5: memref<128x128xbf16, #tpu.memory_space<vmem>>, %arg6: memref<128x128xbf16, #tpu.memory_space<vmem>>, %arg7: memref<1xf32, #tpu.memory_space<smem>>, %arg8: memref<8x128xf32, #tpu.memory_space<vmem>>) attributes {dimension_semantics = [#tpu.dimension_semantics<parallel>, #tpu.dimension_semantics<arbitrary>], iteration_bounds = array<i64: 2, 1>, scalar_prefetch = 0 : i64, scratch_operands = 0 : i64, tpu.core_type = #tpu.core_type<tc>, window_params = [{transform_indices = @transform_0, window_bounds = array<i64: 8, 128>}, {pipeline_mode = #tpu.pipeline_mode<synchronous>, transform_indices = @transform_1, window_bounds = array<i64: 1, 128>}, {pipeline_mode = #tpu.pipeline_mode<synchronous>, transform_indices = @transform_2, window_bounds = array<i64: 1, 128>}, {transform_indices = @transform_3, window_bounds = array<i64: 128, 128>}, {transform_indices = @transform_4, window_bounds = array<i64: 128, 128>}, {transform_indices = @transform_5, window_bounds = array<i64: 1>}, {transform_indices = @transform_6, window_bounds = array<i64: 8, 128>}]} {
    %c0 = arith.constant 0 : index
    %c0_0 = arith.constant 0 : index
    %0 = vector.load %arg2[%c0, %c0_0] : memref<8x128xf32, #tpu.memory_space<vmem>>, vector<8x128xf32>
    %cst = arith.constant dense<0.000000e+00> : vector<8xf32>
    %1 = vector.multi_reduction <add>, %0, %cst [1] : vector<8x128xf32> to vector<8xf32>
    %2 = vector.shape_cast %1 : vector<8xf32> to vector<8x1xf32>
    %cst_1 = arith.constant 3.125000e-02 : f32
    %3 = vector.broadcast %cst_1 : f32 to vector<8x1xf32>
    %4 = arith.mulf %2, %3 : vector<8x1xf32>
    %5 = arith.mulf %0, %0 : vector<8x128xf32>
    %cst_2 = arith.constant dense<0.000000e+00> : vector<8xf32>
    %6 = vector.multi_reduction <add>, %5, %cst_2 [1] : vector<8x128xf32> to vector<8xf32>
    %7 = vector.shape_cast %6 : vector<8xf32> to vector<8x1xf32>
    %cst_3 = arith.constant 3.125000e-02 : f32
    %8 = vector.broadcast %cst_3 : f32 to vector<8x1xf32>
    %9 = arith.mulf %7, %8 : vector<8x1xf32>
    %10 = arith.mulf %4, %4 : vector<8x1xf32>
    %11 = arith.subf %9, %10 : vector<8x1xf32>
    %cst_4 = arith.constant 0.000000e+00 : f32
    %12 = vector.broadcast %cst_4 : f32 to vector<8x1xf32>
    %13 = arith.maximumf %11, %12 : vector<8x1xf32>
    %14 = vector.broadcast %4 : vector<8x1xf32> to vector<8x128xf32>
    %15 = arith.subf %0, %14 : vector<8x128xf32>
    %cst_5 = arith.constant 9.99999974E-6 : f32
    %16 = vector.broadcast %cst_5 : f32 to vector<8x1xf32>
    %17 = arith.addf %13, %16 : vector<8x1xf32>
    %18 = math.rsqrt %17 : vector<8x1xf32>
    %19 = vector.broadcast %18 : vector<8x1xf32> to vector<8x128xf32>
    %20 = arith.mulf %15, %19 : vector<8x128xf32>
    %c0_6 = arith.constant 0 : index
    %c0_7 = arith.constant 0 : index
    %21 = vector.load %arg3[%c0_6, %c0_7] : memref<1x128xf32, #tpu.memory_space<vmem>>, vector<1x128xf32>
    %22 = vector.broadcast %21 : vector<1x128xf32> to vector<8x128xf32>
    %23 = arith.mulf %20, %22 : vector<8x128xf32>
    %c0_8 = arith.constant 0 : index
    %c0_9 = arith.constant 0 : index
    %24 = vector.load %arg4[%c0_8, %c0_9] : memref<1x128xf32, #tpu.memory_space<vmem>>, vector<1x128xf32>
    %25 = vector.broadcast %24 : vector<1x128xf32> to vector<8x128xf32>
    %26 = arith.addf %23, %25 : vector<8x128xf32>
    %27 = arith.truncf %26 : vector<8x128xf32> to vector<8x128xbf16>
    %c0_10 = arith.constant 0 : index
    %c0_11 = arith.constant 0 : index
    %28 = vector.load %arg5[%c0_10, %c0_11] : memref<128x128xbf16, #tpu.memory_space<vmem>>, vector<128x128xbf16>
    %cst_12 = arith.constant dense<0.000000e+00> : vector<8x128xf32>
    %29 = tpu.matmul %27, %28, %cst_12 {dimension_numbers = #tpu.dot_dimension_numbers<[1], [0], [0], [1], [0, 0, 1, 1], [], []>} : vector<8x128xbf16>, vector<128x128xbf16>, vector<8x128xf32> -> vector<8x128xf32>
    %cst_13 = arith.constant 0.000000e+00 : f32
    %30 = vector.broadcast %cst_13 : f32 to vector<8x128xf32>
    %31 = arith.maximumf %29, %30 : vector<8x128xf32>
    %32 = arith.truncf %31 : vector<8x128xf32> to vector<8x128xbf16>
    %c0_14 = arith.constant 0 : index
    %c0_15 = arith.constant 0 : index
    %33 = vector.load %arg6[%c0_14, %c0_15] : memref<128x128xbf16, #tpu.memory_space<vmem>>, vector<128x128xbf16>
    %cst_16 = arith.constant dense<0.000000e+00> : vector<8x128xf32>
    %34 = tpu.matmul %32, %33, %cst_16 {dimension_numbers = #tpu.dot_dimension_numbers<[1], [0], [0], [1], [0, 0, 1, 1], [], []>} : vector<8x128xbf16>, vector<128x128xbf16>, vector<8x128xf32> -> vector<8x128xf32>
    %c0_17 = arith.constant 0 : index
    %35 = memref.load %arg7[%c0_17] : memref<1xf32, #tpu.memory_space<smem>>
    %36 = vector.broadcast %35 : f32 to vector<8x128xf32>
    %37 = arith.mulf %34, %36 : vector<8x128xf32>
    %c0_18 = arith.constant 0 : index
    %c0_19 = arith.constant 0 : index
    %38 = vector.load %arg2[%c0_18, %c0_19] : memref<8x128xf32, #tpu.memory_space<vmem>>, vector<8x128xf32>
    %39 = arith.addf %37, %38 : vector<8x128xf32>
    %c0_20 = arith.constant 0 : index
    %c0_21 = arith.constant 0 : index
    %40 = vector.load %arg8[%c0_20, %c0_21] : memref<8x128xf32, #tpu.memory_space<vmem>>, vector<8x128xf32>
    tpu.vector_store %arg8[%c0_20, %c0_21], %39 {strides = array<i32>} : memref<8x128xf32, #tpu.memory_space<vmem>>, vector<8x128xf32>,
    return
  }
  func.func @transform_0(%arg0: i32, %arg1: i32) -> (i32, i32) {
    %c0_i32 = arith.constant 0 : i32
    %c0_i32_0 = arith.constant 0 : i32
    return %arg0, %c0_i32 : i32, i32
  }
  func.func @transform_1(%arg0: i32, %arg1: i32) -> (i32, i32) {
    %c0_i32 = arith.constant 0 : i32
    %c0_i32_0 = arith.constant 0 : i32
    %c0_i32_1 = arith.constant 0 : i32
    return %c0_i32, %c0_i32_0 : i32, i32
  }
  func.func @transform_2(%arg0: i32, %arg1: i32) -> (i32, i32) {
    %c0_i32 = arith.constant 0 : i32
    %c0_i32_0 = arith.constant 0 : i32
    %c0_i32_1 = arith.constant 0 : i32
    return %c0_i32, %c0_i32_0 : i32, i32
  }
  func.func @transform_3(%arg0: i32, %arg1: i32) -> (i32, i32) {
    %c0_i32 = arith.constant 0 : i32
    %c0_i32_0 = arith.constant 0 : i32
    return %c0_i32, %arg1 : i32, i32
  }
  func.func @transform_4(%arg0: i32, %arg1: i32) -> (i32, i32) {
    %c0_i32 = arith.constant 0 : i32
    %c0_i32_0 = arith.constant 0 : i32
    return %arg1, %c0_i32 : i32, i32
  }
  func.func @transform_5(%arg0: i32, %arg1: i32) -> i32 {
    %c0_i32 = arith.constant 0 : i32
    %c0_i32_0 = arith.constant 0 : i32
    return %c0_i32 : i32
  }
  func.func @transform_6(%arg0: i32, %arg1: i32) -> (i32, i32) {
    %c0_i32 = arith.constant 0 : i32
    %c0_i32_0 = arith.constant 0 : i32
    return %arg0, %c0_i32 : i32, i32
  }
}

</mosaic_0001>

<llo_original>
// kernel: tpu_custom_call.1
$region0: #{tpu_custom_call.1}
  #allocation0 [shape = 'u32[]', space=smem, size = 0x4, offset = 0x4, fixed_abs, tag = 'smem constant byte address 0x4 - core index']
  #allocation1 [shape = 'u32[72,128]{1,0:T(1,128)}', space=vmem, size = 0x9000, scoped, tag = 'internal scratch']
  #allocation2 [shape = 'f32[1]{0:T(128)S(6)}', space=smem, size = 0x200, scoped, tag = 'scoped memory for tpu_custom_call.1']
  %s0 = inlined_call_operand.hbm [shape: f32[16,128], index: 0, kind: input, shape index: {}]
  %s1 = inlined_call_operand.vmem [shape: f32[1,128], index: 1, kind: input, shape index: {}]
  %s2 = inlined_call_operand.vmem [shape: f32[1,128], index: 2, kind: input, shape index: {}]
  %s3 = inlined_call_operand.hbm [shape: bf16[128,128], index: 3, kind: input, shape index: {}]
  %s4 = inlined_call_operand.hbm [shape: bf16[128,128], index: 4, kind: input, shape index: {}]
  %s5 = inlined_call_operand.<no memory space> [shape: f32[1], index: 5, kind: input, shape index: {}]
  %s6 = inlined_call_operand.hbm [shape: f32[16,128], index: 6, kind: output, shape index: {}]
  %s7 = sld [smem:[#allocation0]]
  $region69: #{tpu_custom_call.1} parent=0
    _
  %s9 = ssub.s32 1, %s7
  %s10 = scalar_select 0, %s9, %s7
  %11 = sst [smem:[#allocation2]] %s5
  $region1: #{tpu_custom_call.1} parent=0
    #allocation3 [shape = 'u8[8192]{0}', space=vmem, size = 0x2000, scoped, tag = 'input window, operand 0']
    #allocation4 [shape = 's32[2]{0}', space=sflag, size = 0x8, scoped, tag = 'scoped memory for tpu_custom_call.1']
    #allocation5 [shape = 's32[2]{0}', space=sflag, size = 0x8, scoped, tag = 'scoped memory for tpu_custom_call.1']
    #allocation6 [shape = 'u8[32768]{0}', space=vmem, size = 0x8000, scoped, tag = 'input window, operand 3, single buffered']
    #allocation7 [shape = 's32[1]{0}', space=sflag, size = 0x4, scoped, tag = 'scoped memory for tpu_custom_call.1']
    #allocation8 [shape = 'u8[32768]{0}', space=vmem, size = 0x8000, scoped, tag = 'input window, operand 4, single buffered']
    #allocation9 [shape = 'u8[8192]{0}', space=vmem, size = 0x2000, scoped, tag = 'output window, operand 0']
    %12 = vsyncpa [#allocation4], 0
    %s13 = scalar_lea.sflag [#allocation4], 1
    %14 = vsyncpa %s13, 0
    %15 = vsyncpa [#allocation7], 0
    %16 = vsyncpa [#allocation5], 0
    %s17 = scalar_lea.sflag [#allocation5], 1
    %18 = vsyncpa %s17, 0
    loop: start=0, step=1, limit=4
    $region2: #{tpu_custom_call.1} parent=1 // loop_pre_header
      _
    $region3: #{tpu_custom_call.1} parent=1 // loop_header
      %s20 = sphi 0, %s24
      %p21 = scmp.ge.s32.totalorder %s20, 4
      %s27 = sphi 0, %s39
      %s28 = sphi 0, %s35
      %s29 = sphi 0, %s27
      %s30 = sphi 0, %s28
      %s31 = sphi 0, %s29
      %s32 = sphi 0, %s30
      %s42 = sphi 0, %s44
      %s45 = sphi 0, %s42
      %s46 = sphi 0, %s45
      %s62 = sphi 0, %s46
      %s66 = sphi 0, %s66
      %s68 = sphi 0, %s66
      %s69 = sphi 0, %s68
      %s83 = sphi 0, %s69
      %s87 = sphi 0, %s87
      %s89 = sphi 0, %s87
      %s90 = sphi 0, %s89
      %s104 = sphi 0, %s90
      %s110 = sphi 0, %s112
      %s113 = sphi 0, %s110
      %s114 = sphi 0, %s113
      %s130 = sphi 0, %s114
      %s136 = sphi 0, %s138
      %s139 = sphi 0, %s136
      %s140 = sphi 0, %s139
      %s156 = sphi 0, %s140
      %s160 = sphi 0, %s160
      %s162 = sphi 0, %s160
      %s163 = sphi 0, %s162
      %s177 = sphi 0, %s163
      %s183 = sphi 0, %s185
      %s186 = sphi 0, %s183
      %s187 = sphi 0, %s186
      %s203 = sphi 0, %s187
    $region4: #{tpu_custom_call.1} parent=1 // loop_header_branch
      %23 = sbr.rel (%p21) target = $region8
    $region5: #{tpu_custom_call.1} parent=1 // loop_body
      %s25 = ssub.s32 %s20, 1
      %s26 = ssub.s32 %s20, 2
      %s33 = sadd.s32 1, %s28
      %p34 = scmp.ge.s32.totalorder %s33, 1
      %s35 = scalar_select %p34, 0, %s33
      %s36 = sadd.s32 1, %s27
      %s37 = scalar_select %p34, %s36, %s27
      %p38 = scmp.ge.s32.totalorder %s37, 2
      %s39 = scalar_select %p38, 0, %s37
      %s40 = ssub.s32 %s27, %s39
      %p41 = scmp.eq.s32.totalorder %s40, 0
      %s43 = sadd.s32 %s42, 1
      %s44 = scalar_select %p41, %s42, %s43
      %p47 = pneg %p41
      %p48 = scmp.eq.s32.totalorder %s20, 1
      %p49 = por %p47, %p48
      %p50 = scmp.ne.s32.totalorder %s42, %s45
      %p51 = scmp.eq.s32.totalorder %s20, 0
      %p52 = por %p50, %p51
      %p53 = scmp.ne.s32.totalorder %s42, %s45
      %p54 = scmp.eq.s32.totalorder %s25, 1
      %p55 = por %p53, %p54
      %p56 = scmp.ne.s32.totalorder %s45, %s46
      %p57 = scmp.eq.s32.totalorder %s25, 0
      %p58 = por %p56, %p57
      %p59 = scmp.ne.s32.totalorder %s45, %s46
      %p60 = scmp.eq.s32.totalorder %s26, 1
      %p61 = por %p59, %p60
      %p63 = scmp.ne.s32.totalorder %s46, %s62
      %p64 = scmp.eq.s32.totalorder %s26, 0
      %p65 = por %p63, %p64
      %s67 = sadd.s32 %s66, 1
      %p70 = scmp.eq.s32.totalorder %s20, 1
      %p71 = scmp.ne.s32.totalorder %s66, %s68
      %p72 = scmp.eq.s32.totalorder %s20, 0
      %p73 = por %p71, %p72
      %p74 = scmp.ne.s32.totalorder %s66, %s68
      %p75 = scmp.eq.s32.totalorder %s25, 1
      %p76 = por %p74, %p75
      %p77 = scmp.ne.s32.totalorder %s68, %s69
      %p78 = scmp.eq.s32.totalorder %s25, 0
      %p79 = por %p77, %p78
      %p80 = scmp.ne.s32.totalorder %s68, %s69
      %p81 = scmp.eq.s32.totalorder %s26, 1
      %p82 = por %p80, %p81
      %p84 = scmp.ne.s32.totalorder %s69, %s83
      %p85 = scmp.eq.s32.totalorder %s26, 0
      %p86 = por %p84, %p85
      %s88 = sadd.s32 %s87, 1
      %p91 = scmp.eq.s32.totalorder %s20, 1
      %p92 = scmp.ne.s32.totalorder %s87, %s89
      %p93 = scmp.eq.s32.totalorder %s20, 0
      %p94 = por %p92, %p93
      %p95 = scmp.ne.s32.totalorder %s87, %s89
      %p96 = scmp.eq.s32.totalorder %s25, 1
      %p97 = por %p95, %p96
      %p98 = scmp.ne.s32.totalorder %s89, %s90
      %p99 = scmp.eq.s32.totalorder %s25, 0
      %p100 = por %p98, %p99
      %p101 = scmp.ne.s32.totalorder %s89, %s90
      %p102 = scmp.eq.s32.totalorder %s26, 1
      %p103 = por %p101, %p102
      %p105 = scmp.ne.s32.totalorder %s90, %s104
      %p106 = scmp.eq.s32.totalorder %s26, 0
      %p107 = por %p105, %p106
      %s108 = ssub.s32 %s28, %s35
      %p109 = scmp.eq.s32.totalorder %s108, 0
      %s111 = sadd.s32 %s110, 1
      %s112 = scalar_select %p109, %s110, %s111
      %p115 = pneg %p109
      %p116 = scmp.eq.s32.totalorder %s20, 1
      %p117 = por %p115, %p116
      %p118 = scmp.ne.s32.totalorder %s110, %s113
      %p119 = scmp.eq.s32.totalorder %s20, 0
      %p120 = por %p118, %p119
      %p121 = scmp.ne.s32.totalorder %s110, %s113
      %p122 = scmp.eq.s32.totalorder %s25, 1
      %p123 = por %p121, %p122
      %p124 = scmp.ne.s32.totalorder %s113, %s114
      %p125 = scmp.eq.s32.totalorder %s25, 0
      %p126 = por %p124, %p125
      %p127 = scmp.ne.s32.totalorder %s113, %s114
      %p128 = scmp.eq.s32.totalorder %s26, 1
      %p129 = por %p127, %p128
      %p131 = scmp.ne.s32.totalorder %s114, %s130
      %p132 = scmp.eq.s32.totalorder %s26, 0
      %p133 = por %p131, %p132
      %s134 = ssub.s32 %s28, %s35
      %p135 = scmp.eq.s32.totalorder %s134, 0
      %s137 = sadd.s32 %s136, 1
      %s138 = scalar_select %p135, %s136, %s137
      %p141 = pneg %p135
      %p142 = scmp.eq.s32.totalorder %s20, 1
      %p143 = por %p141, %p142
      %p144 = scmp.ne.s32.totalorder %s136, %s139
      %p145 = scmp.eq.s32.totalorder %s20, 0
      %p146 = por %p144, %p145
      %p147 = scmp.ne.s32.totalorder %s136, %s139
      %p148 = scmp.eq.s32.totalorder %s25, 1
      %p149 = por %p147, %p148
      %p150 = scmp.ne.s32.totalorder %s139, %s140
      %p151 = scmp.eq.s32.totalorder %s25, 0
      %p152 = por %p150, %p151
      %p153 = scmp.ne.s32.totalorder %s139, %s140
      %p154 = scmp.eq.s32.totalorder %s26, 1
      %p155 = por %p153, %p154
      %p157 = scmp.ne.s32.totalorder %s140, %s156
      %p158 = scmp.eq.s32.totalorder %s26, 0
      %p159 = por %p157, %p158
      %s161 = sadd.s32 %s160, 1
      %p164 = scmp.eq.s32.totalorder %s20, 1
      %p165 = scmp.ne.s32.totalorder %s160, %s162
      %p166 = scmp.eq.s32.totalorder %s20, 0
      %p167 = por %p165, %p166
      %p168 = scmp.ne.s32.totalorder %s160, %s162
      %p169 = scmp.eq.s32.totalorder %s25, 1
      %p170 = por %p168, %p169
      %p171 = scmp.ne.s32.totalorder %s162, %s163
      %p172 = scmp.eq.s32.totalorder %s25, 0
      %p173 = por %p171, %p172
      %p174 = scmp.ne.s32.totalorder %s162, %s163
      %p175 = scmp.eq.s32.totalorder %s26, 1
      %p176 = por %p174, %p175
      %p178 = scmp.ne.s32.totalorder %s163, %s177
      %p179 = scmp.eq.s32.totalorder %s26, 0
      %p180 = por %p178, %p179
      %s181 = ssub.s32 %s27, %s39
      %p182 = scmp.eq.s32.totalorder %s181, 0
      %s184 = sadd.s32 %s183, 1
      %s185 = scalar_select %p182, %s183, %s184
      %p188 = pneg %p182
      %p189 = scmp.eq.s32.totalorder %s20, 1
      %p190 = por %p188, %p189
      %p191 = scmp.ne.s32.totalorder %s183, %s186
      %p192 = scmp.eq.s32.totalorder %s20, 0
      %p193 = por %p191, %p192
      %p194 = scmp.ne.s32.totalorder %s183, %s186
      %p195 = scmp.eq.s32.totalorder %s25, 1
      %p196 = por %p194, %p195
      %p197 = scmp.ne.s32.totalorder %s186, %s187
      %p198 = scmp.eq.s32.totalorder %s25, 0
      %p199 = por %p197, %p198
      %p200 = scmp.ne.s32.totalorder %s186, %s187
      %p201 = scmp.eq.s32.totalorder %s26, 1
      %p202 = por %p200, %p201
      %p204 = scmp.ne.s32.totalorder %s187, %s203
      %p205 = scmp.eq.s32.totalorder %s26, 0
      %p206 = por %p204, %p205
      %p207 = scmp.le.s32.totalorder 1, %s20
      %p208 = scmp.lt.s32.totalorder %s20, 3
      %p209 = pnand %p207, %p208
      %p210 = pneg %p209
      // Predicated region
      $region9: #{tpu_custom_call.1} parent=5 // pred_check
        _
      $region10: #{tpu_custom_call.1} parent=5 // pred_check_branch
        %212 = sbr.rel (%p209) target = $region12
      $region11: #{tpu_custom_call.1} parent=5 // pred_region
        %s213 = ssub.s32 %s20, 1
        // Predicated region
        $region13: #{tpu_custom_call.1} parent=11 // pred_check
          %p214 = pneg %p79
        $region14: #{tpu_custom_call.1} parent=11 // pred_check_branch
          %216 = sbr.rel (%p214) target = $region16
        $region15: #{tpu_custom_call.1} parent=11 // pred_region
          _
        $region16: #{tpu_custom_call.1} parent=11 // pred_fallthru
          _
        // Predicated region
        $region17: #{tpu_custom_call.1} parent=11 // pred_check
          %p217 = pneg %p100
        $region18: #{tpu_custom_call.1} parent=11 // pred_check_branch
          %219 = sbr.rel (%p217) target = $region20
        $region19: #{tpu_custom_call.1} parent=11 // pred_region
          _
        $region20: #{tpu_custom_call.1} parent=11 // pred_fallthru
          _
        // Predicated region
        $region21: #{tpu_custom_call.1} parent=11 // pred_check
          %p220 = pneg %p126
        $region22: #{tpu_custom_call.1} parent=11 // pred_check_branch
          %222 = sbr.rel (%p220) target = $region24
        $region23: #{tpu_custom_call.1} parent=11 // pred_region
          %224 = vsyncadd [#allocation7], 0
          %s225 = smul.addr %s30, 4
          %s226 = scalar_lea.hbm %s3, %s225
          %s227 = sshll.u32 %s226, 4
          %s228 = int_to_ptr.hbm [resolvable:$true] %s227
          %s229 = sshll.u32 [#allocation6], 4
          %s230 = int_to_ptr.vmem [resolvable:$true] %s229
          %235 = dma.hbm_to_vmem [thread:$0]  %s228, 1024, %s230, [#allocation7], 64, 64, 4
        $region24: #{tpu_custom_call.1} parent=11 // pred_fallthru
          _
        // Predicated region
        $region25: #{tpu_custom_call.1} parent=11 // pred_check
          %p236 = pneg %p152
        $region26: #{tpu_custom_call.1} parent=11 // pred_check_branch
          %238 = sbr.rel (%p236) target = $region28
        $region27: #{tpu_custom_call.1} parent=11 // pred_region
          %s239 = smul.u32 16, %s30
          %241 = vsyncadd [#allocation7], 0
          %s242 = smul.addr %s239, 4
          %s243 = scalar_lea.hbm %s4, %s242
          %s244 = sshll.u32 %s243, 4
          %s245 = int_to_ptr.hbm [resolvable:$true] %s244
          %s246 = sshll.u32 [#allocation8], 4
          %s247 = int_to_ptr.vmem [resolvable:$true] %s246
          %252 = dma.hbm_to_vmem [thread:$0]  %s245, 1024, %s247, [#allocation7], 64, 64, 4
        $region28: #{tpu_custom_call.1} parent=11 // pred_fallthru
          _
        // Predicated region
        $region29: #{tpu_custom_call.1} parent=11 // pred_check
          %p253 = pneg %p173
        $region30: #{tpu_custom_call.1} parent=11 // pred_check_branch
          %255 = sbr.rel (%p253) target = $region32
        $region31: #{tpu_custom_call.1} parent=11 // pred_region
          _
        $region32: #{tpu_custom_call.1} parent=11 // pred_fallthru
          _
      $region12: #{tpu_custom_call.1} parent=5 // pred_fallthru
        _
      %p256 = scmp.lt.s32.totalorder %s20, 2
      // Predicated region
      $region33: #{tpu_custom_call.1} parent=5 // pred_check
        %p257 = pneg %p256
      $region34: #{tpu_custom_call.1} parent=5 // pred_check_branch
        %259 = sbr.rel (%p257) target = $region36
      $region35: #{tpu_custom_call.1} parent=5 // pred_region
        // Predicated region
        $region37: #{tpu_custom_call.1} parent=35 // pred_check
          %p260 = pneg %p52
        $region38: #{tpu_custom_call.1} parent=35 // pred_check_branch
          %262 = sbr.rel (%p260) target = $region40
        $region39: #{tpu_custom_call.1} parent=35 // pred_region
          %s263 = sand.u32 %s42, 1
          %s264 = scalar_lea.sflag [#allocation4], %s263
          %s265 = sand.u32 %s42, 1
          %s266 = smul.addr %s265, 8
          %s267 = scalar_lea.vmem [#allocation3], %s266
          %269 = vsyncadd %s264, 0
          %s270 = smul.addr %s27, 8
          %s271 = scalar_lea.hbm %s0, %s270
          %s273 = sshll.u32 %s271, 4
          %s274 = int_to_ptr.hbm [resolvable:$true] %s273
          %s275 = sshll.u32 %s267, 4
          %s276 = int_to_ptr.vmem [resolvable:$true] %s275
          %278 = dma.hbm_to_vmem [thread:$0]  %s274, 128, %s276, %s264
        $region40: #{tpu_custom_call.1} parent=35 // pred_fallthru
          _
      $region36: #{tpu_custom_call.1} parent=5 // pred_fallthru
        _
      %p279 = scmp.le.s32.totalorder 1, %s20
      %p280 = scmp.lt.s32.totalorder %s20, 3
      %p281 = pnand %p279, %p280
      %p282 = pneg %p281
      // Predicated region
      $region41: #{tpu_custom_call.1} parent=5 // pred_check
        _
      $region42: #{tpu_custom_call.1} parent=5 // pred_check_branch
        %284 = sbr.rel (%p281) target = $region44
      $region43: #{tpu_custom_call.1} parent=5 // pred_region
        %s285 = ssub.s32 %s20, 1
        %s286 = sand.u32 %s45, 1
        %s287 = scalar_lea.sflag [#allocation4], %s286
        %s288 = sand.u32 %s45, 1
        %s289 = smul.addr %s288, 8
        %s290 = scalar_lea.vmem [#allocation3], %s289
        // Predicated region
        $region45: #{tpu_custom_call.1} parent=43 // pred_check
          %p291 = pneg %p58
        $region46: #{tpu_custom_call.1} parent=43 // pred_check_branch
          %293 = sbr.rel (%p291) target = $region48
        $region47: #{tpu_custom_call.1} parent=43 // pred_region
          %295 = dma.done %s287, 128
        $region48: #{tpu_custom_call.1} parent=43 // pred_fallthru
          _
        // Predicated region
        $region49: #{tpu_custom_call.1} parent=43 // pred_check
          %p296 = pneg %p126
        $region50: #{tpu_custom_call.1} parent=43 // pred_check_branch
          %298 = sbr.rel (%p296) target = $region52
        $region51: #{tpu_custom_call.1} parent=43 // pred_region
          %300 = dma.done [#allocation7], 1024
        $region52: #{tpu_custom_call.1} parent=43 // pred_fallthru
          _
        // Predicated region
        $region53: #{tpu_custom_call.1} parent=43 // pred_check
          %p301 = pneg %p152
        $region54: #{tpu_custom_call.1} parent=43 // pred_check_branch
          %303 = sbr.rel (%p301) target = $region56
        $region55: #{tpu_custom_call.1} parent=43 // pred_region
          %305 = dma.done [#allocation7], 1024
        $region56: #{tpu_custom_call.1} parent=43 // pred_fallthru
          _
        %s306 = sand.u32 %s45, 1
        %s307 = scalar_lea.sflag [#allocation4], %s306
        %s308 = sand.u32 %s45, 1
        %s309 = smul.addr %s308, 8
        %s310 = scalar_lea.vmem [#allocation3], %s309
        %p311 = pneg %p58
        %p312 = pneg %p55
        %p313 = pneg %p79
        %p314 = pneg %p76
        %p315 = pneg %p100
        %p316 = pneg %p97
        %p317 = pneg %p126
        %p318 = pneg %p123
        %p319 = pneg %p152
        %p320 = pneg %p149
        %p321 = pneg %p173
        %p322 = pneg %p170
        %p323 = pneg %p199
        %p324 = pneg %p196
        %s325 = sand.u32 %s186, 1
        %s326 = scalar_lea.sflag [#allocation5], %s325
        %s327 = sand.u32 %s186, 1
        %s328 = smul.addr %s327, 8
        %s329 = scalar_lea.vmem [#allocation9], %s328
        %s330 = smul.u32 16, %s30
        %v331 = vld [vmem:[%s290] sm:$0xff]
        %332 = vadd.xlane.f32.xlu0 %v331
        %v333 = vpop.xlane.xlu0 %332
        %v334 = vmul.f32 %v333, 0.03125
        %v335 = vmul.f32 %v331, %v331
        %336 = vadd.xlane.f32.xlu0 %v335
        %v337 = vpop.xlane.xlu0 %336
        %v338 = vmul.f32 %v337, 0.03125
        %v339 = vmul.f32 %v334, %v334
        %v340 = vsub.f32 %v338, %v339
        %v341 = vmax.f32 %v340, 0.0
        %v342 = vsub.f32 %v331, %v334
        %v343 = vadd.f32 %v341, 1e-05
        %v344 = vrsqrt.pop %v343
        %v345 = vmul.f32 %v344, %v343
        %v346 = vmul.f32 %v345, %v344
        %v347 = vmul.f32 0.5, %v346
        %v348 = vsub.f32 1.5, %v347
        %v349 = vmul.f32 %v344, %v348
        %vm350 = vweird.f32 %v343
        %vm351 = vweird.f32 %v344
        %vm352 = vmor %vm350, %vm351
        %v353 = vsel %vm352, %v344, %v349
        %v354 = vmul.f32 %v342, %v353
        %v355 = vld [vmem:[%s1] sm:$0x1]
        %v357 = vperm.slane %v355, 0
        %v359 = vmul.f32 %v354, %v357
        %v360 = vld [vmem:[%s2] sm:$0x1]
        %v362 = vperm.slane %v360, 0
        %v364 = vadd.f32 %v359, %v362
        %v365 = vpack.c.bf16 %v364, %v364
        %v366 = vld [vmem:[#allocation6] sm:$0xf]
        %v367 = vld [vmem:[#allocation6 + $0x4] sm:$0xf]
        %v368 = vld [vmem:[#allocation6 + $0x8] sm:$0xf]
        %v369 = vld [vmem:[#allocation6 + $0xc] sm:$0xf]
        %v370 = vld [vmem:[#allocation6 + $0x10] sm:$0xf]
        %v371 = vld [vmem:[#allocation6 + $0x14] sm:$0xf]
        %v372 = vld [vmem:[#allocation6 + $0x18] sm:$0xf]
        %v373 = vld [vmem:[#allocation6 + $0x1c] sm:$0xf]
        %v374 = vld [vmem:[#allocation6 + $0x20] sm:$0xf]
        %v375 = vld [vmem:[#allocation6 + $0x24] sm:$0xf]
        %v376 = vld [vmem:[#allocation6 + $0x28] sm:$0xf]
        %v377 = vld [vmem:[#allocation6 + $0x2c] sm:$0xf]
        %v378 = vld [vmem:[#allocation6 + $0x30] sm:$0xf]
        %v379 = vld [vmem:[#allocation6 + $0x34] sm:$0xf]
        %v380 = vld [vmem:[#allocation6 + $0x38] sm:$0xf]
        %v381 = vld [vmem:[#allocation6 + $0x3c] sm:$0xf]
        %v398 = vunpack.c.l.b16 %v366
        %v399 = vunpack.c.l.b16 %v367
        %v400 = vunpack.c.l.b16 %v368
        %v401 = vunpack.c.l.b16 %v369
        %v402 = vunpack.c.l.b16 %v370
        %v403 = vunpack.c.l.b16 %v371
        %v404 = vunpack.c.l.b16 %v372
        %v405 = vunpack.c.l.b16 %v373
        %v406 = vunpack.c.l.b16 %v374
        %v407 = vunpack.c.l.b16 %v375
        %v408 = vunpack.c.l.b16 %v376
        %v409 = vunpack.c.l.b16 %v377
        %v410 = vunpack.c.l.b16 %v378
        %v411 = vunpack.c.l.b16 %v379
        %v412 = vunpack.c.l.b16 %v380
        %v413 = vunpack.c.l.b16 %v381
        %v414 = vpack.c.b16 %v399, %v398
        %v415 = vpack.c.b16 %v401, %v400
        %v416 = vpack.c.b16 %v403, %v402
        %v417 = vpack.c.b16 %v405, %v404
        %v418 = vpack.c.b16 %v407, %v406
        %v419 = vpack.c.b16 %v409, %v408
        %v420 = vpack.c.b16 %v411, %v410
        %v421 = vpack.c.b16 %v413, %v412
        %430 = vmatpush.bf16.msra.mxu0 %v421
        %431 = vmatpush.bf16.msra.mxu0 %v420
        %432 = vmatpush.bf16.msra.mxu0 %v419
        %433 = vmatpush.bf16.msra.mxu0 %v418
        %434 = vmatpush.bf16.msra.mxu0 %v417
        %435 = vmatpush.bf16.msra.mxu0 %v416
        %436 = vmatpush.bf16.msra.mxu0 %v415
        %437 = vmatpush.bf16.msra.mxu0 %v414
        %438 = vmatmul.bf16.gmra.mxu0 %v365
        %v439 = vpop.f32.mrf.mxu0
        %v440 = vadd.f32 0.0, %v439
        %v441 = vpop.f32.mrf.mxu0
        %442 = vdwg.mxu0
        %v443 = vmax.f32 %v440, 0.0
        %v444 = vpack.c.bf16 %v443, %v443
        %v445 = vld [vmem:[#allocation8] sm:$0xf]
        %v446 = vld [vmem:[#allocation8 + $0x4] sm:$0xf]
        %v447 = vld [vmem:[#allocation8 + $0x8] sm:$0xf]
        %v448 = vld [vmem:[#allocation8 + $0xc] sm:$0xf]
        %v449 = vld [vmem:[#allocation8 + $0x10] sm:$0xf]
        %v450 = vld [vmem:[#allocation8 + $0x14] sm:$0xf]
        %v451 = vld [vmem:[#allocation8 + $0x18] sm:$0xf]
        %v452 = vld [vmem:[#allocation8 + $0x1c] sm:$0xf]
        %v453 = vld [vmem:[#allocation8 + $0x20] sm:$0xf]
        %v454 = vld [vmem:[#allocation8 + $0x24] sm:$0xf]
        %v455 = vld [vmem:[#allocation8 + $0x28] sm:$0xf]
        %v456 = vld [vmem:[#allocation8 + $0x2c] sm:$0xf]
        %v457 = vld [vmem:[#allocation8 + $0x30] sm:$0xf]
        %v458 = vld [vmem:[#allocation8 + $0x34] sm:$0xf]
        %v459 = vld [vmem:[#allocation8 + $0x38] sm:$0xf]
        %v460 = vld [vmem:[#allocation8 + $0x3c] sm:$0xf]
        %v477 = vunpack.c.l.b16 %v445
        %v478 = vunpack.c.l.b16 %v446
        %v479 = vunpack.c.l.b16 %v447
        %v480 = vunpack.c.l.b16 %v448
        %v481 = vunpack.c.l.b16 %v449
        %v482 = vunpack.c.l.b16 %v450
        %v483 = vunpack.c.l.b16 %v451
        %v484 = vunpack.c.l.b16 %v452
        %v485 = vunpack.c.l.b16 %v453
        %v486 = vunpack.c.l.b16 %v454
        %v487 = vunpack.c.l.b16 %v455
        %v488 = vunpack.c.l.b16 %v456
        %v489 = vunpack.c.l.b16 %v457
        %v490 = vunpack.c.l.b16 %v458
        %v491 = vunpack.c.l.b16 %v459
        %v492 = vunpack.c.l.b16 %v460
        %v493 = vpack.c.b16 %v478, %v477
        %v494 = vpack.c.b16 %v480, %v479
        %v495 = vpack.c.b16 %v482, %v481
        %v496 = vpack.c.b16 %v484, %v483
        %v497 = vpack.c.b16 %v486, %v485
        %v498 = vpack.c.b16 %v488, %v487
        %v499 = vpack.c.b16 %v490, %v489
        %v500 = vpack.c.b16 %v492, %v491
        %509 = vmatpush.bf16.msra.mxu0 %v500
        %510 = vmatpush.bf16.msra.mxu0 %v499
        %511 = vmatpush.bf16.msra.mxu0 %v498
        %512 = vmatpush.bf16.msra.mxu0 %v497
        %513 = vmatpush.bf16.msra.mxu0 %v496
        %514 = vmatpush.bf16.msra.mxu0 %v495
        %515 = vmatpush.bf16.msra.mxu0 %v494
        %516 = vmatpush.bf16.msra.mxu0 %v493
        %517 = vmatmul.bf16.gmra.mxu0 %v444
        %v518 = vpop.f32.mrf.mxu0
        %v519 = vadd.f32 0.0, %v518
        %v520 = vpop.f32.mrf.mxu0
        %521 = vdwg.mxu0
        %s522 = sld [smem:[#allocation2]]
        %v523 = vstv %s522
        %v524 = vmul.f32 %v519, %v523
        %v525 = vadd.f32 %v524, %v331
        %526 = vst [vmem:[%s329] sm:$0xff] %v525
        %s527 = sand.u32 %s186, 1
        %s528 = scalar_lea.sflag [#allocation5], %s527
        %s529 = sand.u32 %s186, 1
        %s530 = smul.addr %s529, 8
        %s531 = scalar_lea.vmem [#allocation9], %s530
        // Predicated region
        $region57: #{tpu_custom_call.1} parent=43 // pred_check
          %p532 = pneg %p196
        $region58: #{tpu_custom_call.1} parent=43 // pred_check_branch
          %534 = sbr.rel (%p532) target = $region60
        $region59: #{tpu_custom_call.1} parent=43 // pred_region
          %536 = vsyncadd %s528, 0
          %s537 = smul.addr %s29, 8
          %s538 = scalar_lea.hbm %s6, %s537
          %s540 = sshll.u32 %s531, 4
          %s541 = int_to_ptr.vmem [resolvable:$true] %s540
          %s542 = sshll.u32 %s538, 4
          %s543 = int_to_ptr.hbm [resolvable:$true] %s542
          %545 = dma.vmem_to_hbm [thread:$0]  %s541, 128, %s543, %s528
        $region60: #{tpu_custom_call.1} parent=43 // pred_fallthru
          _
      $region44: #{tpu_custom_call.1} parent=5 // pred_fallthru
        _
      %p546 = scmp.le.s32.totalorder 2, %s20
      // Predicated region
      $region61: #{tpu_custom_call.1} parent=5 // pred_check
        %p547 = pneg %p546
      $region62: #{tpu_custom_call.1} parent=5 // pred_check_branch
        %549 = sbr.rel (%p547) target = $region64
      $region63: #{tpu_custom_call.1} parent=5 // pred_region
        %s550 = ssub.s32 %s20, 2
        // Predicated region
        $region65: #{tpu_custom_call.1} parent=63 // pred_check
          %p551 = pneg %p202
        $region66: #{tpu_custom_call.1} parent=63 // pred_check_branch
          %553 = sbr.rel (%p551) target = $region68
        $region67: #{tpu_custom_call.1} parent=63 // pred_region
          %s554 = sand.u32 %s187, 1
          %s555 = scalar_lea.sflag [#allocation5], %s554
          %s556 = sand.u32 %s187, 1
          %s557 = smul.addr %s556, 8
          %s558 = scalar_lea.vmem [#allocation9], %s557
          %560 = dma.done %s555, 128
        $region68: #{tpu_custom_call.1} parent=63 // pred_fallthru
          _
      $region64: #{tpu_custom_call.1} parent=5 // pred_fallthru
        _
    $region6: #{tpu_custom_call.1} parent=1 // loop_footer
      %s24 = sadd.s32 1, %s20
    $region7: #{tpu_custom_call.1} parent=1 // loop_footer_branch
      %19 = sbr.rel target = $region3
    $region8: #{tpu_custom_call.1} parent=1 // loop_exit
      _
    %561 = vsyncpa [#allocation4], 1
    %s562 = scalar_lea.sflag [#allocation4], 1
    %563 = vsyncpa %s562, 1
    %564 = vsyncpa [#allocation7], 1
    %565 = vsyncpa [#allocation5], 1
    %s566 = scalar_lea.sflag [#allocation5], 1
    %567 = vsyncpa %s566, 1

</llo_original>
